<compile_context>
chip_gen: v5e
topology: v5e:2x2
jax: 0.10.0
libtpu: 0.0.40
codegen_flags: <defaults>
</compile_context>

<pallas_src>
import jax
import jax.numpy as jnp
from jax.experimental import pallas as pl
from jax.experimental.pallas import tpu as pltpu


def _bias_add_kernel(h_ref, b_ref, o_ref):
    # h_ref: (tile_rows, C) tile of scores; b_ref: (1, C) bias (resident block).
    # Broadcast-add over the row (sublane) axis.
    o_ref[...] = (h_ref[...] + b_ref[...]).astype(o_ref.dtype)


def _round_up(x: int, m: int) -> int:
    return ((x + m - 1) // m) * m


def _tiled_bias_add(
    h2d: jax.Array,
    b2d: jax.Array,
    *,
    max_tile_rows: int,
    donate_input: bool = True,
) -> jax.Array:
    """out[r, c] = h2d[r, c] + b2d[0, c], tiled over rows with a ragged grid."""
    R, C = h2d.shape
    out_dtype = jnp.result_type(h2d.dtype, b2d.dtype)
    b2d = b2d.astype(out_dtype)

    # (8,128) rule: sublane tile must be a multiple of 8 or the full extent.
    max_tile_rows = max(8, (max_tile_rows // 8) * 8)
    if R <= 8:
        tile_rows = R  # full-extent block, single grid step
    else:
        # Split into >= 2 grid steps so v7x's two TensorCores both get work.
        half = _round_up(pl.cdiv(R, 2), 8)
        tile_rows = min(max_tile_rows, half)
    grid = (pl.cdiv(R, tile_rows),)  # ragged edge: padded read, masked write

    # Raise the scoped VMEM limit only when the double-buffered in+out working
    # set would exceed v5e's 16 MiB default (still well under every chip's
    # physical VMEM: 128 MiB v5e/v6e, 64 MiB per-TC on v7x).
    block_bytes = tile_rows * C * jnp.dtype(out_dtype).itemsize
    vmem_limit = 32 * 1024 * 1024 if 4 * block_bytes > 12 * 1024 * 1024 else None

    # Donate the input buffer into the output when dtypes agree (shapes always
    # agree now that there is no padding).
    aliases = {0: 0} if (donate_input and h2d.dtype == out_dtype) else {}

    return pl.pallas_call(
        _bias_add_kernel,
        out_shape=jax.ShapeDtypeStruct((R, C), out_dtype),
        grid=grid,
        in_specs=[
            pl.BlockSpec((tile_rows, C), lambda i: (i, 0)),
            # Constant index_map -> bias block fetched once, kept in VMEM.
            pl.BlockSpec((1, C), lambda i: (0, 0)),
        ],
        out_specs=pl.BlockSpec((tile_rows, C), lambda i: (i, 0)),
        input_output_aliases=aliases,
        compiler_params=pltpu.CompilerParams(
            dimension_semantics=("parallel",),
            vmem_limit_bytes=vmem_limit,
        ),
    )(h2d, b2d)


def ernie45_moe_statics_forward(
    hidden_states: jax.Array,
    e_score_correction_bias: jax.Array,
    *,
    max_tile_rows: int = 8192,
) -> jax.Array:
    """hidden_states: (..., E); e_score_correction_bias: (num_groups=1, E)."""
    orig_shape = hidden_states.shape
    E = orig_shape[-1]
    bias = jnp.reshape(e_score_correction_bias, (-1,))
    assert bias.shape[0] == E, "bias last dim must match hidden_states last dim"

    h2d = jnp.reshape(hidden_states, (-1, E))
    T = h2d.shape[0]
    out_dtype = jnp.result_type(hidden_states.dtype, bias.dtype)

    rep = (128 // E) if (0 < E <= 128 and 128 % E == 0) else 0
    if rep > 0 and T > 0 and T % rep == 0:
        # Lane-dense path: fold `rep` tokens into one full 128-lane row so every
        # load/store uses the full vreg width.  The bias simply repeats every E
        # lanes, so semantics match the broadcast add on the (T, E) layout.
        # Only taken when T divides evenly -> no pad copy ever.
        h_dense = jnp.reshape(h2d, (T // rep, 128))
        b_dense = jnp.reshape(jnp.tile(bias, (rep,)), (1, 128))
        out_dense = _tiled_bias_add(h_dense, b_dense, max_tile_rows=max_tile_rows)
        out = jnp.reshape(out_dense, (T, E))
    else:
        # Generic path: keep E on the lane axis, tile over tokens with a ragged
        # grid (no padding, no slicing).
        out = _tiled_bias_add(
            h2d, jnp.reshape(bias, (1, E)), max_tile_rows=max_tile_rows
        )

    return jnp.reshape(out.astype(out_dtype), orig_shape)


if __name__ == "__main__":
    # Small shapes consistent with the module: config.moe_num_experts = 64.
    num_experts_groups = 1
    num_experts = 64
    tokens = 16

    key = jax.random.PRNGKey(0)
    k_h, k_b, k_h2, k_h3 = jax.random.split(key, 4)

    # hidden_states: router-score-like tensor of shape (tokens, num_experts).
    hidden_states = jax.random.normal(k_h, (tokens, num_experts), dtype=jnp.float32)

    # Parameter from __init__: zeros of shape (num_experts_groups, num_experts);
    # perturbed slightly so the broadcast-add is actually exercised.
    e_score_correction_bias = jnp.zeros((num_experts_groups, num_experts), jnp.float32)
    e_score_correction_bias = e_score_correction_bias + 0.01 * jax.random.normal(
        k_b, (num_experts_groups, num_experts), dtype=jnp.float32
    )

    out = jax.block_until_ready(
        ernie45_moe_statics_forward(hidden_states, e_score_correction_bias)
    )
    ref = hidden_states + jnp.squeeze(e_score_correction_bias)
    assert out.shape == ref.shape and out.dtype == ref.dtype
    assert jnp.allclose(out, ref, atol=1e-6, rtol=1e-6)

    # Ragged token count (not a multiple of the lane-fold factor): exercises the
    # generic (T, E) path with a ragged grid and masked edge block.
    hidden_ragged = jax.random.normal(k_h2, (13, num_experts), dtype=jnp.float32)
    out_r = jax.block_until_ready(
        ernie45_moe_statics_forward(hidden_ragged, e_score_correction_bias)
    )
    ref_r = hidden_ragged + jnp.squeeze(e_score_correction_bias)
    assert out_r.shape == ref_r.shape and out_r.dtype == ref_r.dtype
    assert jnp.allclose(out_r, ref_r, atol=1e-6, rtol=1e-6)

    # Even token count -> lane-dense fold with a 2-step ragged grid (edge block
    # padded on read / masked on write, no wrapper-side padding).
    hidden_med = jax.random.normal(k_h3, (1030, num_experts), dtype=jnp.float32)
    out_m = jax.block_until_ready(
        ernie45_moe_statics_forward(hidden_med, e_score_correction_bias)
    )
    ref_m = hidden_med + jnp.squeeze(e_score_correction_bias)
    assert out_m.shape == ref_m.shape and out_m.dtype == ref_m.dtype
    assert jnp.allclose(out_m, ref_m, atol=1e-6, rtol=1e-6)

    print("KERNEL_OK")
</pallas_src>

<mosaic_0001>
module attributes {stable_mosaic.version = 11 : i64} {
  func.func @_bias_add_kernel(%arg0: i32, %arg1: memref<8x128xf32, #tpu.memory_space<vmem>>, %arg2: memref<1x128xf32, #tpu.memory_space<vmem>>, %arg3: memref<8x128xf32, #tpu.memory_space<vmem>>) attributes {dimension_semantics = [#tpu.dimension_semantics<parallel>], iteration_bounds = array<i64: 1>, scalar_prefetch = 0 : i64, scratch_operands = 0 : i64, tpu.core_type = #tpu.core_type<tc>, window_params = [{transform_indices = @transform_0, window_bounds = array<i64: 8, 128>}, {pipeline_mode = #tpu.pipeline_mode<synchronous>, transform_indices = @transform_1, window_bounds = array<i64: 1, 128>}, {transform_indices = @transform_2, window_bounds = array<i64: 8, 128>}]} {
    %c0 = arith.constant 0 : index
    %c0_0 = arith.constant 0 : index
    %0 = vector.load %arg1[%c0, %c0_0] : memref<8x128xf32, #tpu.memory_space<vmem>>, vector<8x128xf32>
    %c0_1 = arith.constant 0 : index
    %c0_2 = arith.constant 0 : index
    %1 = vector.load %arg2[%c0_1, %c0_2] : memref<1x128xf32, #tpu.memory_space<vmem>>, vector<1x128xf32>
    %2 = vector.broadcast %1 : vector<1x128xf32> to vector<8x128xf32>
    %3 = arith.addf %0, %2 : vector<8x128xf32>
    %c0_3 = arith.constant 0 : index
    %c0_4 = arith.constant 0 : index
    %4 = vector.load %arg3[%c0_3, %c0_4] : memref<8x128xf32, #tpu.memory_space<vmem>>, vector<8x128xf32>
    tpu.vector_store %arg3[%c0_3, %c0_4], %3 {strides = array<i32>} : memref<8x128xf32, #tpu.memory_space<vmem>>, vector<8x128xf32>,
    return
  }
  func.func @transform_0(%arg0: i32) -> (i32, i32) {
    %c0_i32 = arith.constant 0 : i32
    %c0_i32_0 = arith.constant 0 : i32
    return %arg0, %c0_i32 : i32, i32
  }
  func.func @transform_1(%arg0: i32) -> (i32, i32) {
    %c0_i32 = arith.constant 0 : i32
    %c0_i32_0 = arith.constant 0 : i32
    %c0_i32_1 = arith.constant 0 : i32
    return %c0_i32, %c0_i32_0 : i32, i32
  }
  func.func @transform_2(%arg0: i32) -> (i32, i32) {
    %c0_i32 = arith.constant 0 : i32
    %c0_i32_0 = arith.constant 0 : i32
    return %arg0, %c0_i32 : i32, i32
  }
}

</mosaic_0001>

<llo_original>
// kernel: tpu_custom_call.1
$region0: #{tpu_custom_call.1}
  #allocation0 [shape = 'u32[]', space=smem, size = 0x4, offset = 0x4, fixed_abs, tag = 'smem constant byte address 0x4 - core index']
  #allocation1 [shape = 'u32[72,128]{1,0:T(1,128)}', space=vmem, size = 0x9000, scoped, tag = 'internal scratch']
  %s0 = inlined_call_operand.hbm [shape: f32[8,128], index: 0, kind: input, shape index: {}, may-alias: {0,2}]
  %s1 = inlined_call_operand.vmem [shape: f32[1,128], index: 1, kind: input, shape index: {}]
  %s2 = inlined_call_operand.hbm [shape: f32[8,128], index: 2, kind: output, shape index: {}, may-alias: {0,2}]
  %s3 = sld [smem:[#allocation0]]
  $region22: #{tpu_custom_call.1} parent=0
    _
  %s5 = ssub.s32 1, %s3
  %s6 = scalar_select 0, %s5, %s3
  $region1: #{tpu_custom_call.1} parent=0
    #allocation2 [shape = 'u8[4096]{0}', space=vmem, size = 0x1000, scoped, tag = 'input window, operand 0, single buffered']
    #allocation3 [shape = 's32[1]{0}', space=sflag, size = 0x4, scoped, tag = 'scoped memory for tpu_custom_call.1']
    #allocation4 [shape = 's32[1]{0}', space=sflag, size = 0x4, scoped, tag = 'scoped memory for tpu_custom_call.1']
    #allocation5 [shape = 'u8[4096]{0}', space=vmem, size = 0x1000, scoped, tag = 'output window, operand 0, single buffered']
    %7 = vsyncpa [#allocation3], 0
    %8 = vsyncpa [#allocation4], 0
    // Predicated region
    $region2: #{tpu_custom_call.1} parent=1 // pred_check
      _
    $region3: #{tpu_custom_call.1} parent=1 // pred_check_branch
      %10 = sbr.rel (0) target = $region5
    $region4: #{tpu_custom_call.1} parent=1 // pred_region
      %12 = vsyncadd [#allocation3], 0
      %s14 = sshll.u32 %s0, 4
      %s15 = int_to_ptr.hbm [resolvable:$true] %s14
      %s16 = sshll.u32 [#allocation2], 4
      %s17 = int_to_ptr.vmem [resolvable:$true] %s16
      %19 = dma.hbm_to_vmem [thread:$0]  %s15, 128, %s17, [#allocation3]
    $region5: #{tpu_custom_call.1} parent=1 // pred_fallthru
      _
    // Predicated region
    $region6: #{tpu_custom_call.1} parent=1 // pred_check
      _
    $region7: #{tpu_custom_call.1} parent=1 // pred_check_branch
      %21 = sbr.rel (0) target = $region9
    $region8: #{tpu_custom_call.1} parent=1 // pred_region
      _
    $region9: #{tpu_custom_call.1} parent=1 // pred_fallthru
      _
    // Predicated region
    $region10: #{tpu_custom_call.1} parent=1 // pred_check
      _
    $region11: #{tpu_custom_call.1} parent=1 // pred_check_branch
      %23 = sbr.rel (0) target = $region13
    $region12: #{tpu_custom_call.1} parent=1 // pred_region
      %25 = dma.done [#allocation3], 128
    $region13: #{tpu_custom_call.1} parent=1 // pred_fallthru
      _
    %v26 = vld [vmem:[#allocation2] sm:$0xff]
    %v27 = vld [vmem:[%s1] sm:$0x1]
    %v29 = vperm.slane %v27, 0
    %v31 = vadd.f32 %v26, %v29
    %32 = vst [vmem:[#allocation5] sm:$0xff] %v31
    // Predicated region
    $region14: #{tpu_custom_call.1} parent=1 // pred_check
      _
    $region15: #{tpu_custom_call.1} parent=1 // pred_check_branch
      %34 = sbr.rel (0) target = $region17
    $region16: #{tpu_custom_call.1} parent=1 // pred_region
      %36 = vsyncadd [#allocation4], 0
      %s38 = sshll.u32 [#allocation5], 4
      %s39 = int_to_ptr.vmem [resolvable:$true] %s38
      %s40 = sshll.u32 %s2, 4
      %s41 = int_to_ptr.hbm [resolvable:$true] %s40
      %43 = dma.vmem_to_hbm [thread:$0]  %s39, 128, %s41, [#allocation4]
    $region17: #{tpu_custom_call.1} parent=1 // pred_fallthru
      _
    // Predicated region
    $region18: #{tpu_custom_call.1} parent=1 // pred_check
      _
    $region19: #{tpu_custom_call.1} parent=1 // pred_check_branch
      %45 = sbr.rel (0) target = $region21
    $region20: #{tpu_custom_call.1} parent=1 // pred_region
      %47 = dma.done [#allocation4], 128
    $region21: #{tpu_custom_call.1} parent=1 // pred_fallthru
      _
    %48 = vsyncpa [#allocation3], 1
    %49 = vsyncpa [#allocation4], 1

</llo_original>
